<compile_context>
chip_gen: v6e
topology: v6e:2x2x1
jax: 0.10.0
libtpu: 0.0.40
codegen_flags: <defaults>
</compile_context>

<pallas_src>
import functools

import jax
import jax.numpy as jnp
import numpy as np
from jax.experimental import pallas as pl
from jax.experimental.pallas import tpu as pltpu


def _lstm_fc_kernel(x_ref,      # (T*B, D)   time-major-flattened input
                    wih_ref,    # (D, 4H)
                    whh_ref,    # (H, 4H)
                    b_ref,      # (1, 4H)    b_ih + b_hh
                    wfc_ref,    # (1, H)
                    bfc_ref,    # (1, 1)
                    out_ref,    # (B, 1)
                    *, batch, seq_len, hidden):
    B, T, H = batch, seq_len, hidden

    # Hoisted weight / bias loads (read once, reused every step).
    wih = wih_ref[...]
    whh = whh_ref[...]
    bias = b_ref[...]

    # --- Input projection: one matmul covering all T timesteps, off the serial
    # recurrent chain.  Gate order along the 4H axis matches PyTorch: [i,f,g,o].
    zin = jnp.dot(x_ref[...], wih,
                  preferred_element_type=jnp.float32) + bias       # (T*B, 4H)

    h = jnp.zeros((B, H), dtype=jnp.float32)
    c = jnp.zeros((B, H), dtype=jnp.float32)

    # --- Recurrence, fully unrolled (T is a trace-time constant).  Per step the
    # only MXU op on the serial dependency chain is h @ Whh; the zin slices are
    # static, precomputed rows, so the scheduler can hoist their loads under the
    # matmul/EUP latency of earlier steps.
    # NOTE(precision): default MXU precision is enough for 1e-3 agreement with
    # the f32 reference; pass precision=lax.Precision.HIGHEST to jnp.dot if
    # tighter matching with PyTorch is ever required.
    for t in range(T):
        z = zin[t * B:(t + 1) * B, :] + jnp.dot(
            h, whh, preferred_element_type=jnp.float32)             # (B, 4H)

        # Full-width transcendentals (one sigmoid + one tanh over all 4H lanes),
        # then static lane slices per gate — fewer EUP pushes than 4 narrow ops.
        sig_z = jax.nn.sigmoid(z)                                    # (B, 4H)
        tanh_z = jnp.tanh(z)                                         # (B, 4H)
        i_g = sig_z[:, 0 * H:1 * H]
        f_g = sig_z[:, 1 * H:2 * H]
        g_g = tanh_z[:, 2 * H:3 * H]
        o_g = sig_z[:, 3 * H:4 * H]

        c = f_g * c + i_g * g_g
        h = o_g * jnp.tanh(c)

    # --- Final Linear(H, 1) on the last hidden state as a VPU multiply +
    # lane reduction (avoids an MXU push/drain for a 1-column RHS).
    out = jnp.sum(h * wfc_ref[...], axis=-1, keepdims=True) + bfc_ref[...]
    out_ref[...] = out.astype(out_ref.dtype)


def glucose_lstm_forward(x, params):
    """x: (B, T, D) float32 (batch_first, PyTorch convention). Returns (B, 1)."""
    B, T, D = x.shape
    H = params["w_hh"].shape[1]

    # Time-major flatten so the in-kernel input projection is a single
    # (T*B, D) x (D, 4H) matmul and the per-step slices are static, contiguous
    # row blocks.  At these sizes the transpose/reshape is a negligible XLA op;
    # at production sizes it would be replaced by the grid-over-T streaming
    # layout (see header note).
    x_flat = jnp.transpose(x, (1, 0, 2)).reshape(T * B, D).astype(jnp.float32)
    wih_t = params["w_ih"].T.astype(jnp.float32)                  # (D, 4H)
    whh_t = params["w_hh"].T.astype(jnp.float32)                  # (H, 4H)
    b = (params["b_ih"] + params["b_hh"]).reshape(1, 4 * H).astype(jnp.float32)
    wfc_row = params["w_fc"].reshape(1, H).astype(jnp.float32)    # (1, H)
    bfc = params["b_fc"].reshape(1, 1).astype(jnp.float32)

    kernel = functools.partial(_lstm_fc_kernel, batch=B, seq_len=T, hidden=H)
    vmem = pl.BlockSpec(memory_space=pltpu.MemorySpace.VMEM)
    return pl.pallas_call(
        kernel,
        out_shape=jax.ShapeDtypeStruct((B, 1), jnp.float32),
        in_specs=[vmem] * 6,
        out_specs=vmem,
        compiler_params=pltpu.CompilerParams(
            # Actual usage (inputs + live values) is well under 1 MiB; keep an
            # explicit, generous-but-bounded scoped-VMEM request (safe on v7x's
            # 64 MiB part as well as v5e/v6e).
            vmem_limit_bytes=16 * 1024 * 1024,
        ),
    )(x_flat, wih_t, whh_t, b, wfc_row, bfc)


def init_params(key, input_dim, hidden_dim):
    """Deterministic init mirroring PyTorch's uniform(-1/sqrt(H), 1/sqrt(H))."""
    ks = jax.random.split(key, 6)
    bound = 1.0 / np.sqrt(hidden_dim)
    u = lambda k, shape: jax.random.uniform(k, shape, jnp.float32, -bound, bound)
    return {
        "w_ih": u(ks[0], (4 * hidden_dim, input_dim)),
        "w_hh": u(ks[1], (4 * hidden_dim, hidden_dim)),
        "b_ih": u(ks[2], (4 * hidden_dim,)),
        "b_hh": u(ks[3], (4 * hidden_dim,)),
        "w_fc": u(ks[4], (1, hidden_dim)),
        "b_fc": u(ks[5], (1,)),
    }


def reference_forward(x, params):
    """Pure-JAX reference matching torch.nn.LSTM + Linear semantics."""
    B, T, D = x.shape
    H = params["w_hh"].shape[1]
    h = jnp.zeros((B, H), jnp.float32)
    c = jnp.zeros((B, H), jnp.float32)
    for t in range(T):
        z = (x[:, t, :] @ params["w_ih"].T + params["b_ih"]
             + h @ params["w_hh"].T + params["b_hh"])
        i = jax.nn.sigmoid(z[:, 0 * H:1 * H])
        f = jax.nn.sigmoid(z[:, 1 * H:2 * H])
        g = jnp.tanh(z[:, 2 * H:3 * H])
        o = jax.nn.sigmoid(z[:, 3 * H:4 * H])
        c = f * c + i * g
        h = o * jnp.tanh(c)
    return h @ params["w_fc"].T + params["b_fc"]


if __name__ == "__main__":
    B, T, D, H = 2, 8, 4, 32   # batch, seq_len, input_dim, hidden_dim

    key = jax.random.PRNGKey(0)
    k_x, k_p = jax.random.split(key)
    x = jax.random.normal(k_x, (B, T, D), dtype=jnp.float32)
    params = init_params(k_p, D, H)

    out = glucose_lstm_forward(x, params)
    out = jax.block_until_ready(out)

    ref = reference_forward(x, params)
    np.testing.assert_allclose(np.asarray(out), np.asarray(ref),
                               rtol=1e-3, atol=1e-3)

    assert out.shape == (B, 1)
    print("KERNEL_OK")
</pallas_src>

<mosaic_0001>
module attributes {stable_mosaic.version = 11 : i64} {
  func.func @_lstm_fc_kernel(%arg0: memref<16x4xf32, #tpu.memory_space<vmem>>, %arg1: memref<4x128xf32, #tpu.memory_space<vmem>>, %arg2: memref<32x128xf32, #tpu.memory_space<vmem>>, %arg3: memref<1x128xf32, #tpu.memory_space<vmem>>, %arg4: memref<1x32xf32, #tpu.memory_space<vmem>>, %arg5: memref<1x1xf32, #tpu.memory_space<vmem>>, %arg6: memref<2x1xf32, #tpu.memory_space<vmem>>) attributes {dimension_semantics = [], scalar_prefetch = 0 : i64, scratch_operands = 0 : i64, tpu.core_type = #tpu.core_type<tc>} {
    %c0 = arith.constant 0 : index
    %c0_0 = arith.constant 0 : index
    %0 = vector.load %arg1[%c0, %c0_0] : memref<4x128xf32, #tpu.memory_space<vmem>>, vector<4x128xf32>
    %c0_1 = arith.constant 0 : index
    %c0_2 = arith.constant 0 : index
    %1 = vector.load %arg2[%c0_1, %c0_2] : memref<32x128xf32, #tpu.memory_space<vmem>>, vector<32x128xf32>
    %c0_3 = arith.constant 0 : index
    %c0_4 = arith.constant 0 : index
    %2 = vector.load %arg3[%c0_3, %c0_4] : memref<1x128xf32, #tpu.memory_space<vmem>>, vector<1x128xf32>
    %c0_5 = arith.constant 0 : index
    %c0_6 = arith.constant 0 : index
    %3 = vector.load %arg0[%c0_5, %c0_6] : memref<16x4xf32, #tpu.memory_space<vmem>>, vector<16x4xf32>
    %cst = arith.constant dense<0.000000e+00> : vector<16x128xf32>
    %4 = tpu.matmul %3, %0, %cst {dimension_numbers = #tpu.dot_dimension_numbers<[1], [0], [0], [1], [0, 0, 1, 1], [], []>} : vector<16x4xf32>, vector<4x128xf32>, vector<16x128xf32> -> vector<16x128xf32>
    %5 = vector.broadcast %2 : vector<1x128xf32> to vector<16x128xf32>
    %6 = arith.addf %4, %5 : vector<16x128xf32>
    %cst_7 = arith.constant 0.000000e+00 : f32
    %7 = vector.broadcast %cst_7 : f32 to vector<2x32xf32>
    %cst_8 = arith.constant 0.000000e+00 : f32
    %8 = vector.broadcast %cst_8 : f32 to vector<2x32xf32>
    %9 = vector.extract_strided_slice %6 {offsets = [0, 0], sizes = [2, 128], strides = [1, 1]} : vector<16x128xf32> to vector<2x128xf32>
    %cst_9 = arith.constant dense<0.000000e+00> : vector<2x128xf32>
    %10 = tpu.matmul %7, %1, %cst_9 {dimension_numbers = #tpu.dot_dimension_numbers<[1], [0], [0], [1], [0, 0, 1, 1], [], []>} : vector<2x32xf32>, vector<32x128xf32>, vector<2x128xf32> -> vector<2x128xf32>
    %11 = arith.addf %9, %10 : vector<2x128xf32>
    %12 = arith.negf %11 : vector<2x128xf32>
    %13 = math.exp %12 : vector<2x128xf32>
    %cst_10 = arith.constant 1.000000e+00 : f32
    %14 = vector.broadcast %cst_10 : f32 to vector<2x128xf32>
    %15 = arith.addf %14, %13 : vector<2x128xf32>
    %16 = arith.divf %14, %15 : vector<2x128xf32>
    %17 = math.tanh %11 : vector<2x128xf32>
    %18 = vector.extract_strided_slice %16 {offsets = [0, 0], sizes = [2, 32], strides = [1, 1]} : vector<2x128xf32> to vector<2x32xf32>
    %19 = vector.extract_strided_slice %16 {offsets = [0, 32], sizes = [2, 32], strides = [1, 1]} : vector<2x128xf32> to vector<2x32xf32>
    %20 = vector.extract_strided_slice %17 {offsets = [0, 64], sizes = [2, 32], strides = [1, 1]} : vector<2x128xf32> to vector<2x32xf32>
    %21 = vector.extract_strided_slice %16 {offsets = [0, 96], sizes = [2, 32], strides = [1, 1]} : vector<2x128xf32> to vector<2x32xf32>
    %22 = arith.mulf %19, %8 : vector<2x32xf32>
    %23 = arith.mulf %18, %20 : vector<2x32xf32>
    %24 = arith.addf %22, %23 : vector<2x32xf32>
    %25 = math.tanh %24 : vector<2x32xf32>
    %26 = arith.mulf %21, %25 : vector<2x32xf32>
    %27 = vector.extract_strided_slice %6 {offsets = [2, 0], sizes = [2, 128], strides = [1, 1]} : vector<16x128xf32> to vector<2x128xf32>
    %cst_11 = arith.constant dense<0.000000e+00> : vector<2x128xf32>
    %28 = tpu.matmul %26, %1, %cst_11 {dimension_numbers = #tpu.dot_dimension_numbers<[1], [0], [0], [1], [0, 0, 1, 1], [], []>} : vector<2x32xf32>, vector<32x128xf32>, vector<2x128xf32> -> vector<2x128xf32>
    %29 = arith.addf %27, %28 : vector<2x128xf32>
    %30 = arith.negf %29 : vector<2x128xf32>
    %31 = math.exp %30 : vector<2x128xf32>
    %cst_12 = arith.constant 1.000000e+00 : f32
    %32 = vector.broadcast %cst_12 : f32 to vector<2x128xf32>
    %33 = arith.addf %32, %31 : vector<2x128xf32>
    %34 = arith.divf %32, %33 : vector<2x128xf32>
    %35 = math.tanh %29 : vector<2x128xf32>
    %36 = vector.extract_strided_slice %34 {offsets = [0, 0], sizes = [2, 32], strides = [1, 1]} : vector<2x128xf32> to vector<2x32xf32>
    %37 = vector.extract_strided_slice %34 {offsets = [0, 32], sizes = [2, 32], strides = [1, 1]} : vector<2x128xf32> to vector<2x32xf32>
    %38 = vector.extract_strided_slice %35 {offsets = [0, 64], sizes = [2, 32], strides = [1, 1]} : vector<2x128xf32> to vector<2x32xf32>
    %39 = vector.extract_strided_slice %34 {offsets = [0, 96], sizes = [2, 32], strides = [1, 1]} : vector<2x128xf32> to vector<2x32xf32>
    %40 = arith.mulf %37, %24 : vector<2x32xf32>
    %41 = arith.mulf %36, %38 : vector<2x32xf32>
    %42 = arith.addf %40, %41 : vector<2x32xf32>
    %43 = math.tanh %42 : vector<2x32xf32>
    %44 = arith.mulf %39, %43 : vector<2x32xf32>
    %45 = vector.extract_strided_slice %6 {offsets = [4, 0], sizes = [2, 128], strides = [1, 1]} : vector<16x128xf32> to vector<2x128xf32>
    %cst_13 = arith.constant dense<0.000000e+00> : vector<2x128xf32>
    %46 = tpu.matmul %44, %1, %cst_13 {dimension_numbers = #tpu.dot_dimension_numbers<[1], [0], [0], [1], [0, 0, 1, 1], [], []>} : vector<2x32xf32>, vector<32x128xf32>, vector<2x128xf32> -> vector<2x128xf32>
    %47 = arith.addf %45, %46 : vector<2x128xf32>
    %48 = arith.negf %47 : vector<2x128xf32>
    %49 = math.exp %48 : vector<2x128xf32>
    %cst_14 = arith.constant 1.000000e+00 : f32
    %50 = vector.broadcast %cst_14 : f32 to vector<2x128xf32>
    %51 = arith.addf %50, %49 : vector<2x128xf32>
    %52 = arith.divf %50, %51 : vector<2x128xf32>
    %53 = math.tanh %47 : vector<2x128xf32>
    %54 = vector.extract_strided_slice %52 {offsets = [0, 0], sizes = [2, 32], strides = [1, 1]} : vector<2x128xf32> to vector<2x32xf32>
    %55 = vector.extract_strided_slice %52 {offsets = [0, 32], sizes = [2, 32], strides = [1, 1]} : vector<2x128xf32> to vector<2x32xf32>
    %56 = vector.extract_strided_slice %53 {offsets = [0, 64], sizes = [2, 32], strides = [1, 1]} : vector<2x128xf32> to vector<2x32xf32>
    %57 = vector.extract_strided_slice %52 {offsets = [0, 96], sizes = [2, 32], strides = [1, 1]} : vector<2x128xf32> to vector<2x32xf32>
    %58 = arith.mulf %55, %42 : vector<2x32xf32>
    %59 = arith.mulf %54, %56 : vector<2x32xf32>
    %60 = arith.addf %58, %59 : vector<2x32xf32>
    %61 = math.tanh %60 : vector<2x32xf32>
    %62 = arith.mulf %57, %61 : vector<2x32xf32>
    %63 = vector.extract_strided_slice %6 {offsets = [6, 0], sizes = [2, 128], strides = [1, 1]} : vector<16x128xf32> to vector<2x128xf32>
    %cst_15 = arith.constant dense<0.000000e+00> : vector<2x128xf32>
    %64 = tpu.matmul %62, %1, %cst_15 {dimension_numbers = #tpu.dot_dimension_numbers<[1], [0], [0], [1], [0, 0, 1, 1], [], []>} : vector<2x32xf32>, vector<32x128xf32>, vector<2x128xf32> -> vector<2x128xf32>
    %65 = arith.addf %63, %64 : vector<2x128xf32>
    %66 = arith.negf %65 : vector<2x128xf32>
    %67 = math.exp %66 : vector<2x128xf32>
    %cst_16 = arith.constant 1.000000e+00 : f32
    %68 = vector.broadcast %cst_16 : f32 to vector<2x128xf32>
    %69 = arith.addf %68, %67 : vector<2x128xf32>
    %70 = arith.divf %68, %69 : vector<2x128xf32>
    %71 = math.tanh %65 : vector<2x128xf32>
    %72 = vector.extract_strided_slice %70 {offsets = [0, 0], sizes = [2, 32], strides = [1, 1]} : vector<2x128xf32> to vector<2x32xf32>
    %73 = vector.extract_strided_slice %70 {offsets = [0, 32], sizes = [2, 32], strides = [1, 1]} : vector<2x128xf32> to vector<2x32xf32>
    %74 = vector.extract_strided_slice %71 {offsets = [0, 64], sizes = [2, 32], strides = [1, 1]} : vector<2x128xf32> to vector<2x32xf32>
    %75 = vector.extract_strided_slice %70 {offsets = [0, 96], sizes = [2, 32], strides = [1, 1]} : vector<2x128xf32> to vector<2x32xf32>
    %76 = arith.mulf %73, %60 : vector<2x32xf32>
    %77 = arith.mulf %72, %74 : vector<2x32xf32>
    %78 = arith.addf %76, %77 : vector<2x32xf32>
    %79 = math.tanh %78 : vector<2x32xf32>
    %80 = arith.mulf %75, %79 : vector<2x32xf32>
    %81 = vector.extract_strided_slice %6 {offsets = [8, 0], sizes = [2, 128], strides = [1, 1]} : vector<16x128xf32> to vector<2x128xf32>
    %cst_17 = arith.constant dense<0.000000e+00> : vector<2x128xf32>
    %82 = tpu.matmul %80, %1, %cst_17 {dimension_numbers = #tpu.dot_dimension_numbers<[1], [0], [0], [1], [0, 0, 1, 1], [], []>} : vector<2x32xf32>, vector<32x128xf32>, vector<2x128xf32> -> vector<2x128xf32>
    %83 = arith.addf %81, %82 : vector<2x128xf32>
    %84 = arith.negf %83 : vector<2x128xf32>
    %85 = math.exp %84 : vector<2x128xf32>
    %cst_18 = arith.constant 1.000000e+00 : f32
    %86 = vector.broadcast %cst_18 : f32 to vector<2x128xf32>
    %87 = arith.addf %86, %85 : vector<2x128xf32>
    %88 = arith.divf %86, %87 : vector<2x128xf32>
    %89 = math.tanh %83 : vector<2x128xf32>
    %90 = vector.extract_strided_slice %88 {offsets = [0, 0], sizes = [2, 32], strides = [1, 1]} : vector<2x128xf32> to vector<2x32xf32>
    %91 = vector.extract_strided_slice %88 {offsets = [0, 32], sizes = [2, 32], strides = [1, 1]} : vector<2x128xf32> to vector<2x32xf32>
    %92 = vector.extract_strided_slice %89 {offsets = [0, 64], sizes = [2, 32], strides = [1, 1]} : vector<2x128xf32> to vector<2x32xf32>
    %93 = vector.extract_strided_slice %88 {offsets = [0, 96], sizes = [2, 32], strides = [1, 1]} : vector<2x128xf32> to vector<2x32xf32>
    %94 = arith.mulf %91, %78 : vector<2x32xf32>
    %95 = arith.mulf %90, %92 : vector<2x32xf32>
    %96 = arith.addf %94, %95 : vector<2x32xf32>
    %97 = math.tanh %96 : vector<2x32xf32>
    %98 = arith.mulf %93, %97 : vector<2x32xf32>
    %99 = vector.extract_strided_slice %6 {offsets = [10, 0], sizes = [2, 128], strides = [1, 1]} : vector<16x128xf32> to vector<2x128xf32>
    %cst_19 = arith.constant dense<0.000000e+00> : vector<2x128xf32>
    %100 = tpu.matmul %98, %1, %cst_19 {dimension_numbers = #tpu.dot_dimension_numbers<[1], [0], [0], [1], [0, 0, 1, 1], [], []>} : vector<2x32xf32>, vector<32x128xf32>, vector<2x128xf32> -> vector<2x128xf32>
    %101 = arith.addf %99, %100 : vector<2x128xf32>
    %102 = arith.negf %101 : vector<2x128xf32>
    %103 = math.exp %102 : vector<2x128xf32>
    %cst_20 = arith.constant 1.000000e+00 : f32
    %104 = vector.broadcast %cst_20 : f32 to vector<2x128xf32>
    %105 = arith.addf %104, %103 : vector<2x128xf32>
    %106 = arith.divf %104, %105 : vector<2x128xf32>
    %107 = math.tanh %101 : vector<2x128xf32>
    %108 = vector.extract_strided_slice %106 {offsets = [0, 0], sizes = [2, 32], strides = [1, 1]} : vector<2x128xf32> to vector<2x32xf32>
    %109 = vector.extract_strided_slice %106 {offsets = [0, 32], sizes = [2, 32], strides = [1, 1]} : vector<2x128xf32> to vector<2x32xf32>
    %110 = vector.extract_strided_slice %107 {offsets = [0, 64], sizes = [2, 32], strides = [1, 1]} : vector<2x128xf32> to vector<2x32xf32>
    %111 = vector.extract_strided_slice %106 {offsets = [0, 96], sizes = [2, 32], strides = [1, 1]} : vector<2x128xf32> to vector<2x32xf32>
    %112 = arith.mulf %109, %96 : vector<2x32xf32>
    %113 = arith.mulf %108, %110 : vector<2x32xf32>
    %114 = arith.addf %112, %113 : vector<2x32xf32>
    %115 = math.tanh %114 : vector<2x32xf32>
    %116 = arith.mulf %111, %115 : vector<2x32xf32>
    %117 = vector.extract_strided_slice %6 {offsets = [12, 0], sizes = [2, 128], strides = [1, 1]} : vector<16x128xf32> to vector<2x128xf32>
    %cst_21 = arith.constant dense<0.000000e+00> : vector<2x128xf32>
    %118 = tpu.matmul %116, %1, %cst_21 {dimension_numbers = #tpu.dot_dimension_numbers<[1], [0], [0], [1], [0, 0, 1, 1], [], []>} : vector<2x32xf32>, vector<32x128xf32>, vector<2x128xf32> -> vector<2x128xf32>
    %119 = arith.addf %117, %118 : vector<2x128xf32>
    %120 = arith.negf %119 : vector<2x128xf32>
    %121 = math.exp %120 : vector<2x128xf32>
    %cst_22 = arith.constant 1.000000e+00 : f32
    %122 = vector.broadcast %cst_22 : f32 to vector<2x128xf32>
    %123 = arith.addf %122, %121 : vector<2x128xf32>
    %124 = arith.divf %122, %123 : vector<2x128xf32>
    %125 = math.tanh %119 : vector<2x128xf32>
    %126 = vector.extract_strided_slice %124 {offsets = [0, 0], sizes = [2, 32], strides = [1, 1]} : vector<2x128xf32> to vector<2x32xf32>
    %127 = vector.extract_strided_slice %124 {offsets = [0, 32], sizes = [2, 32], strides = [1, 1]} : vector<2x128xf32> to vector<2x32xf32>
    %128 = vector.extract_strided_slice %125 {offsets = [0, 64], sizes = [2, 32], strides = [1, 1]} : vector<2x128xf32> to vector<2x32xf32>
    %129 = vector.extract_strided_slice %124 {offsets = [0, 96], sizes = [2, 32], strides = [1, 1]} : vector<2x128xf32> to vector<2x32xf32>
    %130 = arith.mulf %127, %114 : vector<2x32xf32>
    %131 = arith.mulf %126, %128 : vector<2x32xf32>
    %132 = arith.addf %130, %131 : vector<2x32xf32>
    %133 = math.tanh %132 : vector<2x32xf32>
    %134 = arith.mulf %129, %133 : vector<2x32xf32>
    %135 = vector.extract_strided_slice %6 {offsets = [14, 0], sizes = [2, 128], strides = [1, 1]} : vector<16x128xf32> to vector<2x128xf32>
    %cst_23 = arith.constant dense<0.000000e+00> : vector<2x128xf32>
    %136 = tpu.matmul %134, %1, %cst_23 {dimension_numbers = #tpu.dot_dimension_numbers<[1], [0], [0], [1], [0, 0, 1, 1], [], []>} : vector<2x32xf32>, vector<32x128xf32>, vector<2x128xf32> -> vector<2x128xf32>
    %137 = arith.addf %135, %136 : vector<2x128xf32>
    %138 = arith.negf %137 : vector<2x128xf32>
    %139 = math.exp %138 : vector<2x128xf32>
    %cst_24 = arith.constant 1.000000e+00 : f32
    %140 = vector.broadcast %cst_24 : f32 to vector<2x128xf32>
    %141 = arith.addf %140, %139 : vector<2x128xf32>
    %142 = arith.divf %140, %141 : vector<2x128xf32>
    %143 = math.tanh %137 : vector<2x128xf32>
    %144 = vector.extract_strided_slice %142 {offsets = [0, 0], sizes = [2, 32], strides = [1, 1]} : vector<2x128xf32> to vector<2x32xf32>
    %145 = vector.extract_strided_slice %142 {offsets = [0, 32], sizes = [2, 32], strides = [1, 1]} : vector<2x128xf32> to vector<2x32xf32>
    %146 = vector.extract_strided_slice %143 {offsets = [0, 64], sizes = [2, 32], strides = [1, 1]} : vector<2x128xf32> to vector<2x32xf32>
    %147 = vector.extract_strided_slice %142 {offsets = [0, 96], sizes = [2, 32], strides = [1, 1]} : vector<2x128xf32> to vector<2x32xf32>
    %148 = arith.mulf %145, %132 : vector<2x32xf32>
    %149 = arith.mulf %144, %146 : vector<2x32xf32>
    %150 = arith.addf %148, %149 : vector<2x32xf32>
    %151 = math.tanh %150 : vector<2x32xf32>
    %152 = arith.mulf %147, %151 : vector<2x32xf32>
    %c0_25 = arith.constant 0 : index
    %c0_26 = arith.constant 0 : index
    %153 = vector.load %arg4[%c0_25, %c0_26] : memref<1x32xf32, #tpu.memory_space<vmem>>, vector<1x32xf32>
    %154 = vector.broadcast %153 : vector<1x32xf32> to vector<2x32xf32>
    %155 = arith.mulf %152, %154 : vector<2x32xf32>
    %cst_27 = arith.constant dense<0.000000e+00> : vector<2xf32>
    %156 = vector.multi_reduction <add>, %155, %cst_27 [1] : vector<2x32xf32> to vector<2xf32>
    %157 = vector.shape_cast %156 : vector<2xf32> to vector<2x1xf32>
    %c0_28 = arith.constant 0 : index
    %c0_29 = arith.constant 0 : index
    %158 = vector.load %arg5[%c0_28, %c0_29] : memref<1x1xf32, #tpu.memory_space<vmem>>, vector<1x1xf32>
    %159 = vector.broadcast %158 : vector<1x1xf32> to vector<2x1xf32>
    %160 = arith.addf %157, %159 : vector<2x1xf32>
    %c0_30 = arith.constant 0 : index
    %c0_31 = arith.constant 0 : index
    %161 = vector.load %arg6[%c0_30, %c0_31] : memref<2x1xf32, #tpu.memory_space<vmem>>, vector<2x1xf32>
    tpu.vector_store %arg6[%c0_30, %c0_31], %160 {strides = array<i32>} : memref<2x1xf32, #tpu.memory_space<vmem>>, vector<2x1xf32>,
    return
  }
}

</mosaic_0001>

<llo_original>
// kernel: tpu_custom_call.1
$region0: #{tpu_custom_call.1}
  #allocation0 [shape = 'u32[]', space=smem, size = 0x4, offset = 0x4, fixed_abs, tag = 'smem constant byte address 0x4 - core index']
  #allocation1 [shape = 'u32[144,128]{1,0:T(1,128)}', space=vmem, size = 0x12000, scoped, tag = 'internal scratch']
  #allocation2 [shape = 'f32[1,1]{1,0:T(1,128)S(1)}', space=vmem, size = 0x200, scoped, tag = 'scoped memory for tpu_custom_call.1']
  %s0 = inlined_call_operand.vmem [shape: f32[16,4], index: 0, kind: input, shape index: {}]
  %s1 = inlined_call_operand.vmem [shape: f32[4,128], index: 1, kind: input, shape index: {}]
  %s2 = inlined_call_operand.hbm [shape: f32[32,128], index: 2, kind: input, shape index: {}]
  %s3 = inlined_call_operand.vmem [shape: f32[1,128], index: 3, kind: input, shape index: {}]
  %s4 = inlined_call_operand.vmem [shape: f32[1,32], index: 4, kind: input, shape index: {}]
  %s5 = inlined_call_operand.<no memory space> [shape: f32[1,1], index: 5, kind: input, shape index: {}]
  %s6 = inlined_call_operand.vmem [shape: f32[2,1], index: 6, kind: output, shape index: {}]
  %s7 = sld [smem:[#allocation0]]
  $region38: #{tpu_custom_call.1} parent=0
    _
  %s9 = ssub.s32 1, %s7
  %s10 = scalar_select 0, %s9, %s7
  %v11 = vstv %s5
  %12 = vst [vmem:[#allocation2] sm:$0x1] %v11
  $region1: #{tpu_custom_call.1} parent=0
    #allocation3 [shape = 'u8[16384]{0}', space=vmem, size = 0x4000, scoped, tag = 'input window, operand 2, single buffered']
    #allocation4 [shape = 's32[1]{0}', space=sflag, size = 0x4, scoped, tag = 'scoped memory for tpu_custom_call.1']
    %13 = vsyncpa [#allocation4], 0
    // Predicated region
    $region2: #{tpu_custom_call.1} parent=1 // pred_check
      _
    $region3: #{tpu_custom_call.1} parent=1 // pred_check_branch
      %15 = sbr.rel (0) target = $region5
    $region4: #{tpu_custom_call.1} parent=1 // pred_region
      _
    $region5: #{tpu_custom_call.1} parent=1 // pred_fallthru
      _
    // Predicated region
    $region6: #{tpu_custom_call.1} parent=1 // pred_check
      _
    $region7: #{tpu_custom_call.1} parent=1 // pred_check_branch
      %17 = sbr.rel (0) target = $region9
    $region8: #{tpu_custom_call.1} parent=1 // pred_region
      _
    $region9: #{tpu_custom_call.1} parent=1 // pred_fallthru
      _
    // Predicated region
    $region10: #{tpu_custom_call.1} parent=1 // pred_check
      _
    $region11: #{tpu_custom_call.1} parent=1 // pred_check_branch
      %19 = sbr.rel (0) target = $region13
    $region12: #{tpu_custom_call.1} parent=1 // pred_region
      %s21 = ssub.s32 512, 512
      %22 = vsyncadd [#allocation4], %s21
      %s23 = sshll.u32 [#allocation3], 4
      %s24 = int_to_ptr.vmem [resolvable:$true] %s23
      %29 = dma.hbm_to_vmem [thread:$0]  %s2, 512, %s24, [#allocation4], 128, 128, 8
    $region13: #{tpu_custom_call.1} parent=1 // pred_fallthru
      _
    // Predicated region
    $region14: #{tpu_custom_call.1} parent=1 // pred_check
      _
    $region15: #{tpu_custom_call.1} parent=1 // pred_check_branch
      %31 = sbr.rel (0) target = $region17
    $region16: #{tpu_custom_call.1} parent=1 // pred_region
      _
    $region17: #{tpu_custom_call.1} parent=1 // pred_fallthru
      _
    // Predicated region
    $region18: #{tpu_custom_call.1} parent=1 // pred_check
      _
    $region19: #{tpu_custom_call.1} parent=1 // pred_check_branch
      %33 = sbr.rel (0) target = $region21
    $region20: #{tpu_custom_call.1} parent=1 // pred_region
      _
    $region21: #{tpu_custom_call.1} parent=1 // pred_fallthru
      _
    // Predicated region
    $region22: #{tpu_custom_call.1} parent=1 // pred_check
      _
    $region23: #{tpu_custom_call.1} parent=1 // pred_check_branch
      %35 = sbr.rel (0) target = $region25
    $region24: #{tpu_custom_call.1} parent=1 // pred_region
      _
    $region25: #{tpu_custom_call.1} parent=1 // pred_fallthru
      _
    // Predicated region
    $region26: #{tpu_custom_call.1} parent=1 // pred_check
      _
    $region27: #{tpu_custom_call.1} parent=1 // pred_check_branch
      %37 = sbr.rel (0) target = $region29
    $region28: #{tpu_custom_call.1} parent=1 // pred_region
      %38 = dma.done [#allocation4], 512
    $region29: #{tpu_custom_call.1} parent=1 // pred_fallthru
      _
    %v39 = vld [vmem:[%s1] sm:$0xf]
    %v40 = vld [vmem:[#allocation3] sm:$0xff]
    %v41 = vld [vmem:[#allocation3 + $0x8] sm:$0xff]
    %v42 = vld [vmem:[#allocation3 + $0x10] sm:$0xff]
    %v43 = vld [vmem:[#allocation3 + $0x18] sm:$0xff]
    %v44 = vld [vmem:[%s3] sm:$0x1]
    %v45 = vld [vmem:[%s0] sm:$0xff]
    %v46 = vld [vmem:[%s0 + $0x8] sm:$0xff]
    %v48 = vlaneseq
    %v49 = vshrl.u32 %v48, 7
    %v50 = vsub.s32 0, %v49
    %v51 = vrot.slane %v44, %v50
    %vm53 = vcmask 31744
    %v55 = vsel %vm53, %v45, 0
    %v58 = vsel %vm53, %v46, 0
    %vm60 = vcmask 1043456
    %v62 = vsel %vm60, %v39, 0
    %64 = vmatprep.subr.mxu0 0.0
    %65 = vmatpush1.msra.mxu0 0.0
    %66 = vmatprep.subr.mxu0 0.0
    %67 = vmatpush1.msra.mxu0 0.0
    %68 = vmatprep.subr.mxu0 0.0
    %69 = vmatpush1.msra.mxu0 0.0
    %70 = vmatprep.subr.mxu0 0.0
    %71 = vmatpush1.msra.mxu0 0.0
    %72 = vmatprep.subr.mxu0 0.0
    %73 = vmatpush1.msra.mxu0 0.0
    %74 = vmatprep.subr.mxu0 0.0
    %75 = vmatpush1.msra.mxu0 0.0
    %76 = vmatprep.subr.mxu0 0.0
    %77 = vmatpush1.msra.mxu0 0.0
    %78 = vmatprep.subr.mxu0 0.0
    %79 = vmatpush1.msra.mxu0 0.0
    %80 = vmatprep.subr.mxu0 0.0
    %81 = vmatpush1.msra.mxu0 0.0
    %82 = vmatprep.subr.mxu0 0.0
    %83 = vmatpush1.msra.mxu0 0.0
    %84 = vmatprep.subr.mxu0 0.0
    %85 = vmatpush1.msra.mxu0 0.0
    %86 = vmatprep.subr.mxu0 0.0
    %87 = vmatpush1.msra.mxu0 0.0
    %88 = vmatprep.subr.mxu0 0.0
    %89 = vmatpush1.msra.mxu0 0.0
    %90 = vmatprep.subr.mxu0 0.0
    %91 = vmatpush1.msra.mxu0 0.0
    %92 = vmatprep.subr.mxu0 0.0
    %93 = vmatpush1.msra.mxu0 0.0
    %94 = vmatprep.subr.mxu0 0.0
    %95 = vmatpush1.msra.mxu0 %v62
    %96 = vmatprep.subr.mxu0 0.0
    %97 = vmatpush2.msra.mxu0 0.0
    %98 = vmatprep.subr.mxu0 0.0
    %99 = vmatpush2.msra.mxu0 0.0
    %100 = vmatprep.subr.mxu0 0.0
    %101 = vmatpush2.msra.mxu0 0.0
    %102 = vmatprep.subr.mxu0 0.0
    %103 = vmatpush2.msra.mxu0 0.0
    %104 = vmatprep.subr.mxu0 0.0
    %105 = vmatpush2.msra.mxu0 0.0
    %106 = vmatprep.subr.mxu0 0.0
    %107 = vmatpush2.msra.mxu0 0.0
    %108 = vmatprep.subr.mxu0 0.0
    %109 = vmatpush2.msra.mxu0 0.0
    %110 = vmatprep.subr.mxu0 0.0
    %111 = vmatpush2.msra.mxu0 0.0
    %112 = vmatprep.subr.mxu0 0.0
    %113 = vmatpush2.msra.mxu0 0.0
    %114 = vmatprep.subr.mxu0 0.0
    %115 = vmatpush2.msra.mxu0 0.0
    %116 = vmatprep.subr.mxu0 0.0
    %117 = vmatpush2.msra.mxu0 0.0
    %118 = vmatprep.subr.mxu0 0.0
    %119 = vmatpush2.msra.mxu0 0.0
    %120 = vmatprep.subr.mxu0 0.0
    %121 = vmatpush2.msra.mxu0 0.0
    %122 = vmatprep.subr.mxu0 0.0
    %123 = vmatpush2.msra.mxu0 0.0
    %124 = vmatprep.subr.mxu0 0.0
    %125 = vmatpush2.msra.mxu0 0.0
    %126 = vmatprep.subr.mxu0 0.0
    %127 = vmatpush2.msra.mxu0 0.0
    %128 = vmatprep.mubr.f32.mxu0 0.0
    %129 = vmatmul.mubr.f32.gmra.mxu0 %v55
    %v130 = vpop.f32.mrf.mxu0
    %v131 = vadd.f32 %v51, %v130
    %v132 = vpop.f32.mrf.mxu0
    %133 = vmatprep.mubr.f32.mxu0 0.0
    %134 = vmatmul.mubr.f32.gmra.mxu0 %v58
    %v135 = vpop.f32.mrf.mxu0
    %v136 = vadd.f32 %v51, %v135
    %v137 = vpop.f32.mrf.mxu0
    %138 = vdwg.mxu0
    %vm139 = vcmask 261120
    %v141 = vsel %vm139, 0.0, 0
    %143 = vmatprep.subr.mxu0 0.0
    %144 = vmatpush1.msra.mxu0 0.0
    %145 = vmatprep.subr.mxu0 0.0
    %146 = vmatpush1.msra.mxu0 0.0
    %147 = vmatprep.subr.mxu0 0.0
    %148 = vmatpush1.msra.mxu0 0.0
    %149 = vmatprep.subr.mxu0 0.0
    %150 = vmatpush1.msra.mxu0 0.0
    %151 = vmatprep.subr.mxu0 0.0
    %152 = vmatpush1.msra.mxu0 0.0
    %153 = vmatprep.subr.mxu0 0.0
    %154 = vmatpush1.msra.mxu0 0.0
    %155 = vmatprep.subr.mxu0 0.0
    %156 = vmatpush1.msra.mxu0 0.0
    %157 = vmatprep.subr.mxu0 0.0
    %158 = vmatpush1.msra.mxu0 0.0
    %159 = vmatprep.subr.mxu0 0.0
    %160 = vmatpush1.msra.mxu0 0.0
    %161 = vmatprep.subr.mxu0 0.0
    %162 = vmatpush1.msra.mxu0 0.0
    %163 = vmatprep.subr.mxu0 0.0
    %164 = vmatpush1.msra.mxu0 0.0
    %165 = vmatprep.subr.mxu0 0.0
    %166 = vmatpush1.msra.mxu0 0.0
    %167 = vmatprep.subr.mxu0 0.0
    %168 = vmatpush1.msra.mxu0 %v43
    %169 = vmatprep.subr.mxu0 0.0
    %170 = vmatpush1.msra.mxu0 %v42
    %171 = vmatprep.subr.mxu0 0.0
    %172 = vmatpush1.msra.mxu0 %v41
    %173 = vmatprep.subr.mxu0 0.0
    %174 = vmatpush1.msra.mxu0 %v40
    %175 = vmatprep.subr.mxu0 0.0
    %176 = vmatpush2.msra.mxu0 0.0
    %177 = vmatprep.subr.mxu0 0.0
    %178 = vmatpush2.msra.mxu0 0.0
    %179 = vmatprep.subr.mxu0 0.0
    %180 = vmatpush2.msra.mxu0 0.0
    %181 = vmatprep.subr.mxu0 0.0
    %182 = vmatpush2.msra.mxu0 0.0
    %183 = vmatprep.subr.mxu0 0.0
    %184 = vmatpush2.msra.mxu0 0.0
    %185 = vmatprep.subr.mxu0 0.0
    %186 = vmatpush2.msra.mxu0 0.0
    %187 = vmatprep.subr.mxu0 0.0
    %188 = vmatpush2.msra.mxu0 0.0
    %189 = vmatprep.subr.mxu0 0.0
    %190 = vmatpush2.msra.mxu0 0.0
    %191 = vmatprep.subr.mxu0 0.0
    %192 = vmatpush2.msra.mxu0 0.0
    %193 = vmatprep.subr.mxu0 0.0
    %194 = vmatpush2.msra.mxu0 0.0
    %195 = vmatprep.subr.mxu0 0.0
    %196 = vmatpush2.msra.mxu0 0.0
    %197 = vmatprep.subr.mxu0 0.0
    %198 = vmatpush2.msra.mxu0 0.0
    %199 = vmatprep.subr.mxu0 0.0
    %200 = vmatpush2.msra.mxu0 0.0
    %201 = vmatprep.subr.mxu0 0.0
    %202 = vmatpush2.msra.mxu0 0.0
    %203 = vmatprep.subr.mxu0 0.0
    %204 = vmatpush2.msra.mxu0 0.0
    %205 = vmatprep.subr.mxu0 0.0
    %206 = vmatpush2.msra.mxu0 0.0
    %207 = vmatprep.mubr.f32.mxu0 0.0
    %208 = vmatmul.mubr.f32.gmra.mxu0 %v141
    %v209 = vpop.f32.mrf.mxu0
    %v210 = vadd.f32 0.0, %v209
    %v211 = vpop.f32.mrf.mxu0
    %212 = vdwg.mxu0
    %v213 = vadd.f32 %v131, %v210
    %v214 = vxor.u32 %v213, 2147483648
    %v215 = vmul.f32 %v214, 1.442695
    %v216 = vpow.pop %v215
    %v217 = vadd.f32 %v216, 1.0
    %v218 = vrcp.pop %v217
    %v219 = vmul.f32 1.0, %v218
    %v220 = vtanh.pop %v213
    %v221 = vmul.f32 %v219, 0.0
    %223 = vrot.lane.b32.xlu0 %v220, 64
    %v224 = vpop.permute.xlu0 %223
    %v226 = vmul.f32 %v219, %v224
    %228 = vrot.lane.b32.xlu0 %v226, 32
    %v229 = vpop.permute.xlu0 %228
    %v231 = vadd.f32 %v221, %v229
    %v232 = vtanh.pop %v231
    %234 = vrot.lane.b32.xlu0 %v232, 64
    %v235 = vpop.permute.xlu0 %234
    %v237 = vmul.f32 %v219, %v235
    %239 = vrot.lane.b32.xlu0 %v237, 32
    %v240 = vpop.permute.xlu0 %239
    %v241 = vsel %vm139, %v240, 0
    %243 = vmatprep.subr.mxu0 0.0
    %244 = vmatpush1.msra.mxu0 0.0
    %245 = vmatprep.subr.mxu0 0.0
    %246 = vmatpush1.msra.mxu0 0.0
    %247 = vmatprep.subr.mxu0 0.0
    %248 = vmatpush1.msra.mxu0 0.0
    %249 = vmatprep.subr.mxu0 0.0
    %250 = vmatpush1.msra.mxu0 0.0
    %251 = vmatprep.subr.mxu0 0.0
    %252 = vmatpush1.msra.mxu0 0.0
    %253 = vmatprep.subr.mxu0 0.0
    %254 = vmatpush1.msra.mxu0 0.0
    %255 = vmatprep.subr.mxu0 0.0
    %256 = vmatpush1.msra.mxu0 0.0
    %257 = vmatprep.subr.mxu0 0.0
    %258 = vmatpush1.msra.mxu0 0.0
    %259 = vmatprep.subr.mxu0 0.0
    %260 = vmatpush1.msra.mxu0 0.0
    %261 = vmatprep.subr.mxu0 0.0
    %262 = vmatpush1.msra.mxu0 0.0
    %263 = vmatprep.subr.mxu0 0.0
    %264 = vmatpush1.msra.mxu0 0.0
    %265 = vmatprep.subr.mxu0 0.0
    %266 = vmatpush1.msra.mxu0 0.0
    %267 = vmatprep.subr.mxu0 0.0
    %268 = vmatpush1.msra.mxu0 %v43
    %269 = vmatprep.subr.mxu0 0.0
    %270 = vmatpush1.msra.mxu0 %v42
    %271 = vmatprep.subr.mxu0 0.0
    %272 = vmatpush1.msra.mxu0 %v41
    %273 = vmatprep.subr.mxu0 0.0
    %274 = vmatpush1.msra.mxu0 %v40
    %275 = vmatprep.subr.mxu0 0.0
    %276 = vmatpush2.msra.mxu0 0.0
    %277 = vmatprep.subr.mxu0 0.0
    %278 = vmatpush2.msra.mxu0 0.0
    %279 = vmatprep.subr.mxu0 0.0
    %280 = vmatpush2.msra.mxu0 0.0
    %281 = vmatprep.subr.mxu0 0.0
    %282 = vmatpush2.msra.mxu0 0.0
    %283 = vmatprep.subr.mxu0 0.0
    %284 = vmatpush2.msra.mxu0 0.0
    %285 = vmatprep.subr.mxu0 0.0
    %286 = vmatpush2.msra.mxu0 0.0
    %287 = vmatprep.subr.mxu0 0.0
    %288 = vmatpush2.msra.mxu0 0.0
    %289 = vmatprep.subr.mxu0 0.0
    %290 = vmatpush2.msra.mxu0 0.0
    %291 = vmatprep.subr.mxu0 0.0
    %292 = vmatpush2.msra.mxu0 0.0
    %293 = vmatprep.subr.mxu0 0.0
    %294 = vmatpush2.msra.mxu0 0.0
    %295 = vmatprep.subr.mxu0 0.0
    %296 = vmatpush2.msra.mxu0 0.0
    %297 = vmatprep.subr.mxu0 0.0
    %298 = vmatpush2.msra.mxu0 0.0
    %299 = vmatprep.subr.mxu0 0.0
    %300 = vmatpush2.msra.mxu0 0.0
    %301 = vmatprep.subr.mxu0 0.0
    %302 = vmatpush2.msra.mxu0 0.0
    %303 = vmatprep.subr.mxu0 0.0
    %304 = vmatpush2.msra.mxu0 0.0
    %305 = vmatprep.subr.mxu0 0.0
    %306 = vmatpush2.msra.mxu0 0.0
    %307 = vmatprep.mubr.f32.mxu0 0.0
    %308 = vmatmul.mubr.f32.gmra.mxu0 %v241
    %v309 = vpop.f32.mrf.mxu0
    %v310 = vadd.f32 0.0, %v309
    %v311 = vpop.f32.mrf.mxu0
    %312 = vdwg.mxu0
    %v314 = vrot.slane %v310, 6
    %v316 = vadd.f32 %v131, %v314
    %v317 = vxor.u32 %v316, 2147483648
    %v318 = vmul.f32 %v317, 1.442695
    %v319 = vpow.pop %v318
    %v320 = vadd.f32 %v319, 1.0
    %v321 = vrcp.pop %v320
    %v322 = vmul.f32 1.0, %v321
    %v323 = vtanh.pop %v316
    %v325 = vrot.slane %v231, 6
    %v327 = vmul.f32 %v322, %v325
    %329 = vrot.lane.b32.xlu0 %v323, 64
    %v330 = vpop.permute.xlu0 %329
    %v332 = vmul.f32 %v322, %v330
    %334 = vrot.lane.b32.xlu0 %v332, 32
    %v335 = vpop.permute.xlu0 %334
    %v337 = vadd.f32 %v327, %v335
    %v338 = vtanh.pop %v337
    %340 = vrot.lane.b32.xlu0 %v338, 64
    %v341 = vpop.permute.xlu0 %340
    %v343 = vmul.f32 %v322, %v341
    %v345 = vrot.slane %v343, 2
    %346 = vrot.lane.b32.xlu0 %v345, 32
    %v347 = vpop.permute.xlu0 %346
    %v348 = vsel %vm139, %v347, 0
    %350 = vmatprep.subr.mxu0 0.0
    %351 = vmatpush1.msra.mxu0 0.0
    %352 = vmatprep.subr.mxu0 0.0
    %353 = vmatpush1.msra.mxu0 0.0
    %354 = vmatprep.subr.mxu0 0.0
    %355 = vmatpush1.msra.mxu0 0.0
    %356 = vmatprep.subr.mxu0 0.0
    %357 = vmatpush1.msra.mxu0 0.0
    %358 = vmatprep.subr.mxu0 0.0
    %359 = vmatpush1.msra.mxu0 0.0
    %360 = vmatprep.subr.mxu0 0.0
    %361 = vmatpush1.msra.mxu0 0.0
    %362 = vmatprep.subr.mxu0 0.0
    %363 = vmatpush1.msra.mxu0 0.0
    %364 = vmatprep.subr.mxu0 0.0
    %365 = vmatpush1.msra.mxu0 0.0
    %366 = vmatprep.subr.mxu0 0.0
    %367 = vmatpush1.msra.mxu0 0.0
    %368 = vmatprep.subr.mxu0 0.0
    %369 = vmatpush1.msra.mxu0 0.0
    %370 = vmatprep.subr.mxu0 0.0
    %371 = vmatpush1.msra.mxu0 0.0
    %372 = vmatprep.subr.mxu0 0.0
    %373 = vmatpush1.msra.mxu0 0.0
    %374 = vmatprep.subr.mxu0 0.0
    %375 = vmatpush1.msra.mxu0 %v43
    %376 = vmatprep.subr.mxu0 0.0
    %377 = vmatpush1.msra.mxu0 %v42
    %378 = vmatprep.subr.mxu0 0.0
    %379 = vmatpush1.msra.mxu0 %v41
    %380 = vmatprep.subr.mxu0 0.0
    %381 = vmatpush1.msra.mxu0 %v40
    %382 = vmatprep.subr.mxu0 0.0
    %383 = vmatpush2.msra.mxu0 0.0
    %384 = vmatprep.subr.mxu0 0.0
    %385 = vmatpush2.msra.mxu0 0.0
    %386 = vmatprep.subr.mxu0 0.0
    %387 = vmatpush2.msra.mxu0 0.0
    %388 = vmatprep.subr.mxu0 0.0
    %389 = vmatpush2.msra.mxu0 0.0
    %390 = vmatprep.subr.mxu0 0.0
    %391 = vmatpush2.msra.mxu0 0.0
    %392 = vmatprep.subr.mxu0 0.0
    %393 = vmatpush2.msra.mxu0 0.0
    %394 = vmatprep.subr.mxu0 0.0
    %395 = vmatpush2.msra.mxu0 0.0
    %396 = vmatprep.subr.mxu0 0.0
    %397 = vmatpush2.msra.mxu0 0.0
    %398 = vmatprep.subr.mxu0 0.0
    %399 = vmatpush2.msra.mxu0 0.0
    %400 = vmatprep.subr.mxu0 0.0
    %401 = vmatpush2.msra.mxu0 0.0
    %402 = vmatprep.subr.mxu0 0.0
    %403 = vmatpush2.msra.mxu0 0.0
    %404 = vmatprep.subr.mxu0 0.0
    %405 = vmatpush2.msra.mxu0 0.0
    %406 = vmatprep.subr.mxu0 0.0
    %407 = vmatpush2.msra.mxu0 0.0
    %408 = vmatprep.subr.mxu0 0.0
    %409 = vmatpush2.msra.mxu0 0.0
    %410 = vmatprep.subr.mxu0 0.0
    %411 = vmatpush2.msra.mxu0 0.0
    %412 = vmatprep.subr.mxu0 0.0
    %413 = vmatpush2.msra.mxu0 0.0
    %414 = vmatprep.mubr.f32.mxu0 0.0
    %415 = vmatmul.mubr.f32.gmra.mxu0 %v348
    %v416 = vpop.f32.mrf.mxu0
    %v417 = vadd.f32 0.0, %v416
    %v418 = vpop.f32.mrf.mxu0
    %419 = vdwg.mxu0
    %v421 = vrot.slane %v417, 4
    %v423 = vadd.f32 %v131, %v421
    %v424 = vxor.u32 %v423, 2147483648
    %v425 = vmul.f32 %v424, 1.442695
    %v426 = vpow.pop %v425
    %v427 = vadd.f32 %v426, 1.0
    %v428 = vrcp.pop %v427
    %v429 = vmul.f32 1.0, %v428
    %v430 = vtanh.pop %v423
    %v432 = vrot.slane %v337, 6
    %v434 = vmul.f32 %v429, %v432
    %436 = vrot.lane.b32.xlu0 %v430, 64
    %v437 = vpop.permute.xlu0 %436
    %v439 = vmul.f32 %v429, %v437
    %441 = vrot.lane.b32.xlu0 %v439, 32
    %v442 = vpop.permute.xlu0 %441
    %v444 = vadd.f32 %v434, %v442
    %v445 = vtanh.pop %v444
    %447 = vrot.lane.b32.xlu0 %v445, 64
    %v448 = vpop.permute.xlu0 %447
    %v450 = vmul.f32 %v429, %v448
    %v452 = vrot.slane %v450, 4
    %453 = vrot.lane.b32.xlu0 %v452, 32
    %v454 = vpop.permute.xlu0 %453
    %v455 = vsel %vm139, %v454, 0
    %457 = vmatprep.subr.mxu0 0.0
    %458 = vmatpush1.msra.mxu0 0.0
    %459 = vmatprep.subr.mxu0 0.0
    %460 = vmatpush1.msra.mxu0 0.0
    %461 = vmatprep.subr.mxu0 0.0
    %462 = vmatpush1.msra.mxu0 0.0
    %463 = vmatprep.subr.mxu0 0.0
    %464 = vmatpush1.msra.mxu0 0.0
    %465 = vmatprep.subr.mxu0 0.0
    %466 = vmatpush1.msra.mxu0 0.0
    %467 = vmatprep.subr.mxu0 0.0
    %468 = vmatpush1.msra.mxu0 0.0
    %469 = vmatprep.subr.mxu0 0.0
    %470 = vmatpush1.msra.mxu0 0.0
    %471 = vmatprep.subr.mxu0 0.0
    %472 = vmatpush1.msra.mxu0 0.0
    %473 = vmatprep.subr.mxu0 0.0
    %474 = vmatpush1.msra.mxu0 0.0
    %475 = vmatprep.subr.mxu0 0.0
    %476 = vmatpush1.msra.mxu0 0.0
    %477 = vmatprep.subr.mxu0 0.0
    %478 = vmatpush1.msra.mxu0 0.0
    %479 = vmatprep.subr.mxu0 0.0
    %480 = vmatpush1.msra.mxu0 0.0
    %481 = vmatprep.subr.mxu0 0.0
    %482 = vmatpush1.msra.mxu0 %v43
    %483 = vmatprep.subr.mxu0 0.0
    %484 = vmatpush1.msra.mxu0 %v42
    %485 = vmatprep.subr.mxu0 0.0
    %486 = vmatpush1.msra.mxu0 %v41
    %487 = vmatprep.subr.mxu0 0.0
    %488 = vmatpush1.msra.mxu0 %v40
    %489 = vmatprep.subr.mxu0 0.0
    %490 = vmatpush2.msra.mxu0 0.0
    %491 = vmatprep.subr.mxu0 0.0
    %492 = vmatpush2.msra.mxu0 0.0
    %493 = vmatprep.subr.mxu0 0.0
    %494 = vmatpush2.msra.mxu0 0.0
    %495 = vmatprep.subr.mxu0 0.0
    %496 = vmatpush2.msra.mxu0 0.0
    %497 = vmatprep.subr.mxu0 0.0
    %498 = vmatpush2.msra.mxu0 0.0
    %499 = vmatprep.subr.mxu0 0.0
    %500 = vmatpush2.msra.mxu0 0.0
    %501 = vmatprep.subr.mxu0 0.0
    %502 = vmatpush2.msra.mxu0 0.0
    %503 = vmatprep.subr.mxu0 0.0
    %504 = vmatpush2.msra.mxu0 0.0
    %505 = vmatprep.subr.mxu0 0.0
    %506 = vmatpush2.msra.mxu0 0.0
    %507 = vmatprep.subr.mxu0 0.0
    %508 = vmatpush2.msra.mxu0 0.0
    %509 = vmatprep.subr.mxu0 0.0
    %510 = vmatpush2.msra.mxu0 0.0
    %511 = vmatprep.subr.mxu0 0.0
    %512 = vmatpush2.msra.mxu0 0.0
    %513 = vmatprep.subr.mxu0 0.0
    %514 = vmatpush2.msra.mxu0 0.0
    %515 = vmatprep.subr.mxu0 0.0
    %516 = vmatpush2.msra.mxu0 0.0
    %517 = vmatprep.subr.mxu0 0.0
    %518 = vmatpush2.msra.mxu0 0.0
    %519 = vmatprep.subr.mxu0 0.0
    %520 = vmatpush2.msra.mxu0 0.0
    %521 = vmatprep.mubr.f32.mxu0 0.0
    %522 = vmatmul.mubr.f32.gmra.mxu0 %v455
    %v523 = vpop.f32.mrf.mxu0
    %v524 = vadd.f32 0.0, %v523
    %v525 = vpop.f32.mrf.mxu0
    %526 = vdwg.mxu0
    %v528 = vrot.slane %v524, 2
    %v530 = vadd.f32 %v131, %v528
    %v531 = vxor.u32 %v530, 2147483648
    %v532 = vmul.f32 %v531, 1.442695
    %v533 = vpow.pop %v532
    %v534 = vadd.f32 %v533, 1.0
    %v535 = vrcp.pop %v534
    %v536 = vmul.f32 1.0, %v535
    %v537 = vtanh.pop %v530
    %v539 = vrot.slane %v444, 6
    %v541 = vmul.f32 %v536, %v539
    %543 = vrot.lane.b32.xlu0 %v537, 64
    %v544 = vpop.permute.xlu0 %543
    %v546 = vmul.f32 %v536, %v544
    %548 = vrot.lane.b32.xlu0 %v546, 32
    %v549 = vpop.permute.xlu0 %548
    %v551 = vadd.f32 %v541, %v549
    %v552 = vtanh.pop %v551
    %554 = vrot.lane.b32.xlu0 %v552, 64
    %v555 = vpop.permute.xlu0 %554
    %v557 = vmul.f32 %v536, %v555
    %v559 = vrot.slane %v557, 6
    %560 = vrot.lane.b32.xlu0 %v559, 32
    %v561 = vpop.permute.xlu0 %560
    %v562 = vsel %vm139, %v561, 0
    %564 = vmatprep.subr.mxu0 0.0
    %565 = vmatpush1.msra.mxu0 0.0
    %566 = vmatprep.subr.mxu0 0.0
    %567 = vmatpush1.msra.mxu0 0.0
    %568 = vmatprep.subr.mxu0 0.0
    %569 = vmatpush1.msra.mxu0 0.0
    %570 = vmatprep.subr.mxu0 0.0
    %571 = vmatpush1.msra.mxu0 0.0
    %572 = vmatprep.subr.mxu0 0.0
    %573 = vmatpush1.msra.mxu0 0.0
    %574 = vmatprep.subr.mxu0 0.0
    %575 = vmatpush1.msra.mxu0 0.0
    %576 = vmatprep.subr.mxu0 0.0
    %577 = vmatpush1.msra.mxu0 0.0
    %578 = vmatprep.subr.mxu0 0.0
    %579 = vmatpush1.msra.mxu0 0.0
    %580 = vmatprep.subr.mxu0 0.0
    %581 = vmatpush1.msra.mxu0 0.0
    %582 = vmatprep.subr.mxu0 0.0
    %583 = vmatpush1.msra.mxu0 0.0
    %584 = vmatprep.subr.mxu0 0.0
    %585 = vmatpush1.msra.mxu0 0.0
    %586 = vmatprep.subr.mxu0 0.0
    %587 = vmatpush1.msra.mxu0 0.0
    %588 = vmatprep.subr.mxu0 0.0
    %589 = vmatpush1.msra.mxu0 %v43
    %590 = vmatprep.subr.mxu0 0.0
    %591 = vmatpush1.msra.mxu0 %v42
    %592 = vmatprep.subr.mxu0 0.0
    %593 = vmatpush1.msra.mxu0 %v41
    %594 = vmatprep.subr.mxu0 0.0
    %595 = vmatpush1.msra.mxu0 %v40
    %596 = vmatprep.subr.mxu0 0.0
    %597 = vmatpush2.msra.mxu0 0.0
    %598 = vmatprep.subr.mxu0 0.0
    %599 = vmatpush2.msra.mxu0 0.0
    %600 = vmatprep.subr.mxu0 0.0
    %601 = vmatpush2.msra.mxu0 0.0
    %602 = vmatprep.subr.mxu0 0.0
    %603 = vmatpush2.msra.mxu0 0.0
    %604 = vmatprep.subr.mxu0 0.0
    %605 = vmatpush2.msra.mxu0 0.0
    %606 = vmatprep.subr.mxu0 0.0
    %607 = vmatpush2.msra.mxu0 0.0
    %608 = vmatprep.subr.mxu0 0.0
    %609 = vmatpush2.msra.mxu0 0.0
    %610 = vmatprep.subr.mxu0 0.0
    %611 = vmatpush2.msra.mxu0 0.0
    %612 = vmatprep.subr.mxu0 0.0
    %613 = vmatpush2.msra.mxu0 0.0
    %614 = vmatprep.subr.mxu0 0.0
    %615 = vmatpush2.msra.mxu0 0.0
    %616 = vmatprep.subr.mxu0 0.0
    %617 = vmatpush2.msra.mxu0 0.0
    %618 = vmatprep.subr.mxu0 0.0
    %619 = vmatpush2.msra.mxu0 0.0
    %620 = vmatprep.subr.mxu0 0.0
    %621 = vmatpush2.msra.mxu0 0.0
    %622 = vmatprep.subr.mxu0 0.0
    %623 = vmatpush2.msra.mxu0 0.0
    %624 = vmatprep.subr.mxu0 0.0
    %625 = vmatpush2.msra.mxu0 0.0
    %626 = vmatprep.subr.mxu0 0.0
    %627 = vmatpush2.msra.mxu0 0.0
    %628 = vmatprep.mubr.f32.mxu0 0.0
    %629 = vmatmul.mubr.f32.gmra.mxu0 %v562
    %v630 = vpop.f32.mrf.mxu0
    %v631 = vadd.f32 0.0, %v630
    %v632 = vpop.f32.mrf.mxu0
    %633 = vdwg.mxu0
    %v634 = vadd.f32 %v136, %v631
    %v635 = vxor.u32 %v634, 2147483648
    %v636 = vmul.f32 %v635, 1.442695
    %v637 = vpow.pop %v636
    %v638 = vadd.f32 %v637, 1.0
    %v639 = vrcp.pop %v638
    %v640 = vmul.f32 1.0, %v639
    %v641 = vtanh.pop %v634
    %v643 = vrot.slane %v551, 6
    %v645 = vmul.f32 %v640, %v643
    %647 = vrot.lane.b32.xlu0 %v641, 64
    %v648 = vpop.permute.xlu0 %647
    %v650 = vmul.f32 %v640, %v648
    %652 = vrot.lane.b32.xlu0 %v650, 32
    %v653 = vpop.permute.xlu0 %652
    %v655 = vadd.f32 %v645, %v653
    %v656 = vtanh.pop %v655
    %658 = vrot.lane.b32.xlu0 %v656, 64
    %v659 = vpop.permute.xlu0 %658
    %v661 = vmul.f32 %v640, %v659
    %663 = vrot.lane.b32.xlu0 %v661, 32
    %v664 = vpop.permute.xlu0 %663
    %v665 = vsel %vm139, %v664, 0
    %667 = vmatprep.subr.mxu0 0.0
    %668 = vmatpush1.msra.mxu0 0.0
    %669 = vmatprep.subr.mxu0 0.0
    %670 = vmatpush1.msra.mxu0 0.0
    %671 = vmatprep.subr.mxu0 0.0
    %672 = vmatpush1.msra.mxu0 0.0
    %673 = vmatprep.subr.mxu0 0.0
    %674 = vmatpush1.msra.mxu0 0.0
    %675 = vmatprep.subr.mxu0 0.0
    %676 = vmatpush1.msra.mxu0 0.0
    %677 = vmatprep.subr.mxu0 0.0
    %678 = vmatpush1.msra.mxu0 0.0
    %679 = vmatprep.subr.mxu0 0.0
    %680 = vmatpush1.msra.mxu0 0.0
    %681 = vmatprep.subr.mxu0 0.0
    %682 = vmatpush1.msra.mxu0 0.0
    %683 = vmatprep.subr.mxu0 0.0
    %684 = vmatpush1.msra.mxu0 0.0
    %685 = vmatprep.subr.mxu0 0.0
    %686 = vmatpush1.msra.mxu0 0.0
    %687 = vmatprep.subr.mxu0 0.0
    %688 = vmatpush1.msra.mxu0 0.0
    %689 = vmatprep.subr.mxu0 0.0
    %690 = vmatpush1.msra.mxu0 0.0
    %691 = vmatprep.subr.mxu0 0.0
    %692 = vmatpush1.msra.mxu0 %v43
    %693 = vmatprep.subr.mxu0 0.0
    %694 = vmatpush1.msra.mxu0 %v42
    %695 = vmatprep.subr.mxu0 0.0
    %696 = vmatpush1.msra.mxu0 %v41
    %697 = vmatprep.subr.mxu0 0.0
    %698 = vmatpush1.msra.mxu0 %v40
    %699 = vmatprep.subr.mxu0 0.0
    %700 = vmatpush2.msra.mxu0 0.0
    %701 = vmatprep.subr.mxu0 0.0
    %702 = vmatpush2.msra.mxu0 0.0
    %703 = vmatprep.subr.mxu0 0.0
    %704 = vmatpush2.msra.mxu0 0.0
    %705 = vmatprep.subr.mxu0 0.0
    %706 = vmatpush2.msra.mxu0 0.0
    %707 = vmatprep.subr.mxu0 0.0
    %708 = vmatpush2.msra.mxu0 0.0
    %709 = vmatprep.subr.mxu0 0.0
    %710 = vmatpush2.msra.mxu0 0.0
    %711 = vmatprep.subr.mxu0 0.0
    %712 = vmatpush2.msra.mxu0 0.0
    %713 = vmatprep.subr.mxu0 0.0
    %714 = vmatpush2.msra.mxu0 0.0
    %715 = vmatprep.subr.mxu0 0.0
    %716 = vmatpush2.msra.mxu0 0.0
    %717 = vmatprep.subr.mxu0 0.0
    %718 = vmatpush2.msra.mxu0 0.0
    %719 = vmatprep.subr.mxu0 0.0
    %720 = vmatpush2.msra.mxu0 0.0
    %721 = vmatprep.subr.mxu0 0.0
    %722 = vmatpush2.msra.mxu0 0.0
    %723 = vmatprep.subr.mxu0 0.0
    %724 = vmatpush2.msra.mxu0 0.0
    %725 = vmatprep.subr.mxu0 0.0
    %726 = vmatpush2.msra.mxu0 0.0
    %727 = vmatprep.subr.mxu0 0.0
    %728 = vmatpush2.msra.mxu0 0.0
    %729 = vmatprep.subr.mxu0 0.0
    %730 = vmatpush2.msra.mxu0 0.0
    %731 = vmatprep.mubr.f32.mxu0 0.0
    %732 = vmatmul.mubr.f32.gmra.mxu0 %v665
    %v733 = vpop.f32.mrf.mxu0
    %v734 = vadd.f32 0.0, %v733
    %v735 = vpop.f32.mrf.mxu0
    %736 = vdwg.mxu0
    %v738 = vrot.slane %v734, 6
    %v740 = vadd.f32 %v136, %v738
    %v741 = vxor.u32 %v740, 2147483648
    %v742 = vmul.f32 %v741, 1.442695
    %v743 = vpow.pop %v742
    %v744 = vadd.f32 %v743, 1.0
    %v745 = vrcp.pop %v744
    %v746 = vmul.f32 1.0, %v745
    %v747 = vtanh.pop %v740
    %v749 = vrot.slane %v655, 6
    %v751 = vmul.f32 %v746, %v749
    %753 = vrot.lane.b32.xlu0 %v747, 64
    %v754 = vpop.permute.xlu0 %753
    %v756 = vmul.f32 %v746, %v754
    %758 = vrot.lane.b32.xlu0 %v756, 32
    %v759 = vpop.permute.xlu0 %758
    %v761 = vadd.f32 %v751, %v759
    %v762 = vtanh.pop %v761
    %764 = vrot.lane.b32.xlu0 %v762, 64
    %v765 = vpop.permute.xlu0 %764
    %v767 = vmul.f32 %v746, %v765
    %v769 = vrot.slane %v767, 2
    %770 = vrot.lane.b32.xlu0 %v769, 32
    %v771 = vpop.permute.xlu0 %770
    %v772 = vsel %vm139, %v771, 0
    %774 = vmatprep.subr.mxu0 0.0
    %775 = vmatpush1.msra.mxu0 0.0
    %776 = vmatprep.subr.mxu0 0.0
    %777 = vmatpush1.msra.mxu0 0.0
    %778 = vmatprep.subr.mxu0 0.0
    %779 = vmatpush1.msra.mxu0 0.0
    %780 = vmatprep.subr.mxu0 0.0
    %781 = vmatpush1.msra.mxu0 0.0
    %782 = vmatprep.subr.mxu0 0.0
    %783 = vmatpush1.msra.mxu0 0.0
    %784 = vmatprep.subr.mxu0 0.0
    %785 = vmatpush1.msra.mxu0 0.0
    %786 = vmatprep.subr.mxu0 0.0
    %787 = vmatpush1.msra.mxu0 0.0
    %788 = vmatprep.subr.mxu0 0.0
    %789 = vmatpush1.msra.mxu0 0.0
    %790 = vmatprep.subr.mxu0 0.0
    %791 = vmatpush1.msra.mxu0 0.0
    %792 = vmatprep.subr.mxu0 0.0
    %793 = vmatpush1.msra.mxu0 0.0
    %794 = vmatprep.subr.mxu0 0.0
    %795 = vmatpush1.msra.mxu0 0.0
    %796 = vmatprep.subr.mxu0 0.0
    %797 = vmatpush1.msra.mxu0 0.0
    %798 = vmatprep.subr.mxu0 0.0
    %799 = vmatpush1.msra.mxu0 %v43
    %800 = vmatprep.subr.mxu0 0.0
    %801 = vmatpush1.msra.mxu0 %v42
    %802 = vmatprep.subr.mxu0 0.0
    %803 = vmatpush1.msra.mxu0 %v41
    %804 = vmatprep.subr.mxu0 0.0
    %805 = vmatpush1.msra.mxu0 %v40
    %806 = vmatprep.subr.mxu0 0.0
    %807 = vmatpush2.msra.mxu0 0.0
    %808 = vmatprep.subr.mxu0 0.0
    %809 = vmatpush2.msra.mxu0 0.0
    %810 = vmatprep.subr.mxu0 0.0
    %811 = vmatpush2.msra.mxu0 0.0
    %812 = vmatprep.subr.mxu0 0.0
    %813 = vmatpush2.msra.mxu0 0.0
    %814 = vmatprep.subr.mxu0 0.0
    %815 = vmatpush2.msra.mxu0 0.0
    %816 = vmatprep.subr.mxu0 0.0
    %817 = vmatpush2.msra.mxu0 0.0
    %818 = vmatprep.subr.mxu0 0.0
    %819 = vmatpush2.msra.mxu0 0.0
    %820 = vmatprep.subr.mxu0 0.0
    %821 = vmatpush2.msra.mxu0 0.0
    %822 = vmatprep.subr.mxu0 0.0
    %823 = vmatpush2.msra.mxu0 0.0
    %824 = vmatprep.subr.mxu0 0.0
    %825 = vmatpush2.msra.mxu0 0.0
    %826 = vmatprep.subr.mxu0 0.0
    %827 = vmatpush2.msra.mxu0 0.0
    %828 = vmatprep.subr.mxu0 0.0
    %829 = vmatpush2.msra.mxu0 0.0
    %830 = vmatprep.subr.mxu0 0.0
    %831 = vmatpush2.msra.mxu0 0.0
    %832 = vmatprep.subr.mxu0 0.0
    %833 = vmatpush2.msra.mxu0 0.0
    %834 = vmatprep.subr.mxu0 0.0
    %835 = vmatpush2.msra.mxu0 0.0
    %836 = vmatprep.subr.mxu0 0.0
    %837 = vmatpush2.msra.mxu0 0.0
    %838 = vmatprep.mubr.f32.mxu0 0.0
    %839 = vmatmul.mubr.f32.gmra.mxu0 %v772
    %v840 = vpop.f32.mrf.mxu0
    %v841 = vadd.f32 0.0, %v840
    %v842 = vpop.f32.mrf.mxu0
    %843 = vdwg.mxu0
    %v845 = vrot.slane %v841, 4
    %v847 = vadd.f32 %v136, %v845
    %v848 = vxor.u32 %v847, 2147483648
    %v849 = vmul.f32 %v848, 1.442695
    %v850 = vpow.pop %v849
    %v851 = vadd.f32 %v850, 1.0
    %v852 = vrcp.pop %v851
    %v853 = vmul.f32 1.0, %v852
    %v854 = vtanh.pop %v847
    %v856 = vrot.slane %v761, 6
    %v858 = vmul.f32 %v853, %v856
    %860 = vrot.lane.b32.xlu0 %v854, 64
    %v861 = vpop.permute.xlu0 %860
    %v863 = vmul.f32 %v853, %v861
    %865 = vrot.lane.b32.xlu0 %v863, 32
    %v866 = vpop.permute.xlu0 %865
    %v868 = vadd.f32 %v858, %v866
    %v869 = vtanh.pop %v868
    %871 = vrot.lane.b32.xlu0 %v869, 64
    %v872 = vpop.permute.xlu0 %871
    %v874 = vmul.f32 %v853, %v872
    %v876 = vrot.slane %v874, 4
    %877 = vrot.lane.b32.xlu0 %v876, 32
    %v878 = vpop.permute.xlu0 %877
    %v879 = vsel %vm139, %v878, 0
    %881 = vmatprep.subr.mxu0 0.0
    %882 = vmatpush1.msra.mxu0 0.0
    %883 = vmatprep.subr.mxu0 0.0
    %884 = vmatpush1.msra.mxu0 0.0
    %885 = vmatprep.subr.mxu0 0.0
    %886 = vmatpush1.msra.mxu0 0.0
    %887 = vmatprep.subr.mxu0 0.0
    %888 = vmatpush1.msra.mxu0 0.0
    %889 = vmatprep.subr.mxu0 0.0
    %890 = vmatpush1.msra.mxu0 0.0
    %891 = vmatprep.subr.mxu0 0.0
    %892 = vmatpush1.msra.mxu0 0.0
    %893 = vmatprep.subr.mxu0 0.0
    %894 = vmatpush1.msra.mxu0 0.0
    %895 = vmatprep.subr.mxu0 0.0
    %896 = vmatpush1.msra.mxu0 0.0
    %897 = vmatprep.subr.mxu0 0.0
    %898 = vmatpush1.msra.mxu0 0.0
    %899 = vmatprep.subr.mxu0 0.0
    %900 = vmatpush1.msra.mxu0 0.0
    %901 = vmatprep.subr.mxu0 0.0
    %902 = vmatpush1.msra.mxu0 0.0
    %903 = vmatprep.subr.mxu0 0.0
    %904 = vmatpush1.msra.mxu0 0.0
    %905 = vmatprep.subr.mxu0 0.0
    %906 = vmatpush1.msra.mxu0 %v43
    %907 = vmatprep.subr.mxu0 0.0
    %908 = vmatpush1.msra.mxu0 %v42
    %909 = vmatprep.subr.mxu0 0.0
    %910 = vmatpush1.msra.mxu0 %v41
    %911 = vmatprep.subr.mxu0 0.0
    %912 = vmatpush1.msra.mxu0 %v40
    %913 = vmatprep.subr.mxu0 0.0
    %914 = vmatpush2.msra.mxu0 0.0
    %915 = vmatprep.subr.mxu0 0.0
    %916 = vmatpush2.msra.mxu0 0.0
    %917 = vmatprep.subr.mxu0 0.0
    %918 = vmatpush2.msra.mxu0 0.0
    %919 = vmatprep.subr.mxu0 0.0
    %920 = vmatpush2.msra.mxu0 0.0
    %921 = vmatprep.subr.mxu0 0.0
    %922 = vmatpush2.msra.mxu0 0.0
    %923 = vmatprep.subr.mxu0 0.0
    %924 = vmatpush2.msra.mxu0 0.0
    %925 = vmatprep.subr.mxu0 0.0
    %926 = vmatpush2.msra.mxu0 0.0
    %927 = vmatprep.subr.mxu0 0.0
    %928 = vmatpush2.msra.mxu0 0.0
    %929 = vmatprep.subr.mxu0 0.0
    %930 = vmatpush2.msra.mxu0 0.0
    %931 = vmatprep.subr.mxu0 0.0
    %932 = vmatpush2.msra.mxu0 0.0
    %933 = vmatprep.subr.mxu0 0.0
    %934 = vmatpush2.msra.mxu0 0.0
    %935 = vmatprep.subr.mxu0 0.0
    %936 = vmatpush2.msra.mxu0 0.0
    %937 = vmatprep.subr.mxu0 0.0
    %938 = vmatpush2.msra.mxu0 0.0
    %939 = vmatprep.subr.mxu0 0.0
    %940 = vmatpush2.msra.mxu0 0.0
    %941 = vmatprep.subr.mxu0 0.0
    %942 = vmatpush2.msra.mxu0 0.0
    %943 = vmatprep.subr.mxu0 0.0
    %944 = vmatpush2.msra.mxu0 0.0
    %945 = vmatprep.mubr.f32.mxu0 0.0
    %946 = vmatmul.mubr.f32.gmra.mxu0 %v879
    %v947 = vpop.f32.mrf.mxu0
    %v948 = vadd.f32 0.0, %v947
    %v949 = vpop.f32.mrf.mxu0
    %950 = vdwg.mxu0
    %v952 = vrot.slane %v948, 2
    %v954 = vadd.f32 %v136, %v952
    %v955 = vxor.u32 %v954, 2147483648
    %v956 = vmul.f32 %v955, 1.442695
    %v957 = vpow.pop %v956
    %v958 = vadd.f32 %v957, 1.0
    %v959 = vrcp.pop %v958
    %v960 = vmul.f32 1.0, %v959
    %v961 = vtanh.pop %v954
    %v963 = vrot.slane %v868, 6
    %v965 = vmul.f32 %v960, %v963
    %967 = vrot.lane.b32.xlu0 %v961, 64
    %v968 = vpop.permute.xlu0 %967
    %v970 = vmul.f32 %v960, %v968
    %972 = vrot.lane.b32.xlu0 %v970, 32
    %v973 = vpop.permute.xlu0 %972
    %v975 = vadd.f32 %v965, %v973
    %v976 = vtanh.pop %v975
    %978 = vrot.lane.b32.xlu0 %v976, 64
    %v979 = vpop.permute.xlu0 %978
    %v981 = vmul.f32 %v960, %v979
    %v982 = vld [vmem:[%s4] sm:$0x1]
    %v984 = vlaneseq
    %v985 = vshrl.u32 %v984, 7
    %v986 = vsub.s32 0, %v985
    %v987 = vrot.slane %v982, %v986
    %988 = vrot.lane.b32.xlu0 %v987, 96
    %v989 = vpop.permute.xlu0 %988
    %v991 = vmul.f32 %v981, %v989
    %993 = vrot.lane.b32.xlu0 %v991, 32
    %v994 = vpop.permute.xlu0 %993
    %vm996 = vcmask 261126
    %v997 = vsel %vm996, %v994, 0.0
    %998 = vadd.xlane.f32.xlu0 %v997
    %v999 = vpop.xlane.xlu0 %998
    %v1000 = vld [vmem:[#allocation2] sm:$0x1]
    %v1002 = vlaneseq
    %v1003 = vshrl.u32 %v1002, 7
    %v1004 = vsub.s32 0, %v1003
    %v1005 = vrot.slane %v1000, %v1004
    %v1007 = vadd.f32 %v999, %v1005
    %vm1008 = vcmask 7174
    %1009 = vst.msk [vmem:[%s6 - $0x6] sm:$0xc0] %vm1008, %v1007
    // Predicated region
    $region30: #{tpu_custom_call.1} parent=1 // pred_check
      _
    $region31: #{tpu_custom_call.1} parent=1 // pred_check_branch
      %1011 = sbr.rel (0) target = $region33
    $region32: #{tpu_custom_call.1} parent=1 // pred_region
      _
    $region33: #{tpu_custom_call.1} parent=1 // pred_fallthru
      _
    // Predicated region
    $region34: #{tpu_custom_call.1} parent=1 // pred_check
      _
    $region35: #{tpu_custom_call.1} parent=1 // pred_check_branch
      %1013 = sbr.rel (0) target = $region37
    $region36: #{tpu_custom_call.1} parent=1 // pred_region
      _
    $region37: #{tpu_custom_call.1} parent=1 // pred_fallthru
      _
    %1014 = vsyncpa [#allocation4], 1

</llo_original>
